<compile_context>
chip_gen: v6e
topology: v6e:2x2x1
jax: 0.10.0
libtpu: 0.0.40
codegen_flags: <defaults>
</compile_context>

<pallas_src>
import functools
from typing import NamedTuple, Optional

import jax
import jax.numpy as jnp
from jax.experimental import pallas as pl
from jax.experimental.pallas import tpu as pltpu


# --------------------------------------------------------------------------- kernels

def _dense_parallel_kernel(x_ref, w_ref, b_ref, o_ref):
    # x: (Pb, tm, K)   w: (Pb, K, tn)   b: (Pb, 1, tn)   o: (Pb, tm, tn)
    acc = jnp.einsum("pmk,pkn->pmn", x_ref[...], w_ref[...],
                     preferred_element_type=jnp.float32)
    o_ref[...] = (acc + b_ref[...].astype(jnp.float32)).astype(o_ref.dtype)


def _dense_parallel_kernel_ktiled(x_ref, w_ref, b_ref, o_ref, acc_ref):
    # K-tiled variant: K is the innermost ("arbitrary") grid axis, f32 accumulator scratch.
    k = pl.program_id(3)

    @pl.when(k == 0)
    def _():
        acc_ref[...] = jnp.zeros_like(acc_ref)

    acc_ref[...] += jnp.einsum("pmk,pkn->pmn", x_ref[...], w_ref[...],
                               preferred_element_type=jnp.float32)

    @pl.when(k == pl.num_programs(3) - 1)
    def _():
        o_ref[...] = (acc_ref[...] + b_ref[...].astype(jnp.float32)).astype(o_ref.dtype)


# --------------------------------------------------------------------------- helpers

def _round_up(x, m):
    return (x + m - 1) // m * m


def _vmem_budget_bytes():
    """~3/4 of the chip's VMEM; conservative 64 MiB (v7x per-core) fallback."""
    cap = 64 * 1024 * 1024
    try:
        cap = int(pltpu.get_tpu_info().vmem_capacity_bytes)
    except Exception:
        pass
    return (cap * 3) // 4


def _choose_tiles(P, B, K, N_pad, *, x_itemsize, w_itemsize, o_itemsize, budget,
                  min_tm, batch_tile, n_tile, k_tile):
    """Pick (Pb, tm, tk, tn) so the double-buffered per-step footprint fits `budget`."""

    def footprint(pb, tm, tk, tn):
        buf = 2 * pb * (tm * tk * x_itemsize      # x block (double-buffered)
                        + tk * tn * w_itemsize    # W block
                        + tn * w_itemsize         # bias block
                        + tm * tn * o_itemsize)   # out block
        if tk != K:                               # f32 accumulator scratch
            buf += pb * tm * tn * 4
        return buf

    if batch_tile is not None:
        assert B % batch_tile == 0, "batch_tile must divide B"
        tm_cands = [batch_tile]
    else:
        tm_cands = [t for t in (1024, 512, 256, 128, 64, 32, 16, 8)
                    if t >= min_tm and t <= B and B % t == 0] or [B]

    if n_tile is not None:
        assert N_pad % n_tile == 0 and n_tile % 128 == 0
        tn_cands = [n_tile]
    else:
        tn_cands = [t for t in (512, 256, 128) if N_pad % t == 0] or [N_pad]

    if k_tile is not None:
        assert K % k_tile == 0 and (k_tile == K or k_tile % 128 == 0)
        tk_cands = [k_tile]
    else:
        tk_cands = [K]                                   # strongly prefer full-K blocks
        if K % 128 == 0:
            tk_cands += [t for t in (4096, 2048, 1024, 512, 256, 128)
                         if t < K and K % t == 0]

    best = None
    for tk in tk_cands:              # prefer no reduction axis
        for tm in tm_cands:          # then the largest batch tile
            for tn in tn_cands:      # then the widest lane tile
                if footprint(1, tm, tk, tn) <= budget:
                    best = (tm, tk, tn)
                    break
            if best:
                break
        if best:
            break
    if best is None:                 # nothing fits the budget; take the smallest combo
        best = (tm_cands[-1], tk_cands[-1], tn_cands[-1])
    tm, tk, tn = best

    # Fold ensemble members per grid step until each step has ~2M MACs of MXU work,
    # amortizing the ~600-cycle per-step overhead for tiny ensemble MLP shapes.
    divs = [d for d in range(1, P + 1) if P % d == 0]
    pb = 1
    for d in divs:
        if footprint(d, tm, tk, tn) > budget:
            break
        pb = d
        if d * tm * tk * tn >= (1 << 21):
            break
    # Keep at least 2 parallel grid steps when possible so v7x's 2nd TensorCore isn't idle.
    if pb > 1 and (P // pb) * (B // tm) * (N_pad // tn) == 1:
        pb = max(d for d in divs if d <= pb // 2)

    return pb, tm, tk, tn


# --------------------------------------------------------------------------- pallas_call wrapper

@functools.partial(
    jax.jit,
    static_argnames=("out_features", "batch_tile", "n_tile", "k_tile", "out_dtype"))
def _dense_parallel_3d(x, weight, bias, *, out_features, batch_tile=None,
                       n_tile=None, k_tile=None, out_dtype=None):
    """x: (P, B, K), weight: (P, K, N_pad), bias: (P, 1, N_pad) -> (P, B, out_features)."""
    P, B, K = x.shape
    _, Kw, N_pad = weight.shape
    assert Kw == K and weight.shape[0] == P and bias.shape == (P, 1, N_pad)
    assert N_pad % 128 == 0, "use pack_dense_parallel_params (pads out_features to 128 lanes)"
    out_dtype = jnp.dtype(x.dtype if out_dtype is None else out_dtype)

    x_itemsize = jnp.dtype(x.dtype).itemsize
    w_itemsize = jnp.dtype(weight.dtype).itemsize
    min_tm = {1: 32, 2: 16}.get(x_itemsize, 8)           # sublane packing of narrow dtypes

    budget = _vmem_budget_bytes()
    pb, tm, tk, tn = _choose_tiles(
        P, B, K, N_pad,
        x_itemsize=x_itemsize, w_itemsize=w_itemsize, o_itemsize=out_dtype.itemsize,
        budget=budget, min_tm=min_tm,
        batch_tile=batch_tile, n_tile=n_tile, k_tile=k_tile)

    pgrid, m_tiles, n_tiles, nk = P // pb, B // tm, N_pad // tn, K // tk

    # Data-driven loop order: whichever operand streams along the inner axis is re-read
    # (inner-extent) times; make that the smaller one, keep the larger one resident.
    x_bytes = x.size * x_itemsize
    w_bytes = weight.size * w_itemsize
    batch_innermost = x_bytes <= w_bytes                  # W tile resident, x streams

    x_block = (pb, tm, tk)
    w_block = (pb, tk, tn)
    b_block = (pb, 1, tn)
    o_block = (pb, tm, tn)

    if nk == 1:
        kernel = _dense_parallel_kernel
        scratch = []
        dim_sem = ("parallel", "parallel", "parallel")
        if batch_innermost:
            grid = (pgrid, n_tiles, m_tiles)
            x_map = lambda p, j, i: (p, i, 0)
            w_map = lambda p, j, i: (p, 0, j)
            b_map = lambda p, j, i: (p, 0, j)
            o_map = lambda p, j, i: (p, i, j)
        else:
            grid = (pgrid, m_tiles, n_tiles)
            x_map = lambda p, i, j: (p, i, 0)
            w_map = lambda p, i, j: (p, 0, j)
            b_map = lambda p, i, j: (p, 0, j)
            o_map = lambda p, i, j: (p, i, j)
    else:
        kernel = _dense_parallel_kernel_ktiled
        scratch = [pltpu.VMEM((pb, tm, tn), jnp.float32)]
        dim_sem = ("parallel", "parallel", "parallel", "arbitrary")
        if batch_innermost:
            grid = (pgrid, n_tiles, m_tiles, nk)
            x_map = lambda p, j, i, k: (p, i, k)
            w_map = lambda p, j, i, k: (p, k, j)
            b_map = lambda p, j, i, k: (p, 0, j)
            o_map = lambda p, j, i, k: (p, i, j)
        else:
            grid = (pgrid, m_tiles, n_tiles, nk)
            x_map = lambda p, i, j, k: (p, i, k)
            w_map = lambda p, i, j, k: (p, k, j)
            b_map = lambda p, i, j, k: (p, 0, j)
            o_map = lambda p, i, j, k: (p, i, j)

    cost = pl.CostEstimate(
        flops=2 * P * B * K * N_pad,
        bytes_accessed=int(x_bytes + w_bytes
                           + bias.size * jnp.dtype(bias.dtype).itemsize
                           + P * B * N_pad * out_dtype.itemsize),
        transcendentals=0)

    out = pl.pallas_call(
        kernel,
        out_shape=jax.ShapeDtypeStruct((P, B, N_pad), out_dtype),
        grid=grid,
        in_specs=[pl.BlockSpec(x_block, x_map),
                  pl.BlockSpec(w_block, w_map),
                  pl.BlockSpec(b_block, b_map)],
        out_specs=pl.BlockSpec(o_block, o_map),
        scratch_shapes=scratch,
        compiler_params=pltpu.CompilerParams(
            dimension_semantics=dim_sem,
            vmem_limit_bytes=int(budget)),
        cost_estimate=cost,
    )(x, weight, bias)

    if N_pad != out_features:
        out = out[:, :, :out_features]
    return out


# --------------------------------------------------------------------------- public API

class DenseParallelParams(NamedTuple):
    weight: jax.Array        # (P, K, N_pad): kernel-ready (transposed + lane-padded)
    bias: jax.Array          # (P, 1, N_pad)
    out_features: int
    squeeze_parallel: bool   # True for the 2-D F.linear path (n_parallel in (None, 1))


def pack_dense_parallel_params(weight, bias=None) -> DenseParallelParams:
    """One-time packing of DenseParallel parameters into the kernel layout.

    Call once at parameter-load time (NOT per forward call): it does the (out,in)->(in,out)
    transpose for the F.linear path and zero-pads out_features to a multiple of 128 lanes so
    every kernel store is an unmasked, lane-dense vst.
    """
    weight = jnp.asarray(weight)
    if weight.ndim == 2:                       # n_parallel in (None, 1): F.linear weights
        out_f = weight.shape[0]
        w = jnp.swapaxes(weight, 0, 1)[None]   # (1, K, N)
        b = jnp.zeros((out_f,), weight.dtype) if bias is None else jnp.asarray(bias)
        b = b.reshape(1, 1, out_f)
        squeeze = True
    else:                                      # n_parallel > 1: baddbmm weights
        assert weight.ndim == 3
        assert bias is not None, "n_parallel > 1 requires bias (matches the PyTorch module)"
        out_f = weight.shape[2]
        w = weight
        b = jnp.asarray(bias)
        squeeze = False
    n_pad = _round_up(out_f, 128)
    if n_pad != out_f:
        w = jnp.pad(w, ((0, 0), (0, 0), (0, n_pad - out_f)))
        b = jnp.pad(b, ((0, 0), (0, 0), (0, n_pad - out_f)))
    return DenseParallelParams(weight=w, bias=b, out_features=out_f, squeeze_parallel=squeeze)


def dense_parallel_apply(x, params: DenseParallelParams, *, batch_tile=None, n_tile=None,
                         k_tile=None, out_dtype=None):
    """Forward pass with pre-packed params. Matches DenseParallel.forward."""
    kw = dict(out_features=params.out_features, batch_tile=batch_tile, n_tile=n_tile,
              k_tile=k_tile, out_dtype=out_dtype)
    if params.squeeze_parallel:
        lead = x.shape[:-1]
        x2d = x.reshape((-1, x.shape[-1]))
        out = _dense_parallel_3d(x2d[None], params.weight, params.bias, **kw)[0]
        return out.reshape(lead + (params.out_features,))
    assert x.ndim == 3
    return _dense_parallel_3d(x, params.weight, params.bias, **kw)


def dense_parallel_forward(x, weight, bias=None, **kw):
    """Drop-in forward from raw module parameters (packs per call).
    Prefer pack_dense_parallel_params(...) once + dense_parallel_apply(...) per step."""
    return dense_parallel_apply(x, pack_dense_parallel_params(weight, bias), **kw)


# --------------------------------------------------------------------------- demo / checks

if __name__ == "__main__":
    keys = jax.random.split(jax.random.PRNGKey(0), 9)

    def check(out, ref, atol, rtol):
        out = jax.block_until_ready(out)
        o32 = out.astype(jnp.float32)
        r32 = ref.astype(jnp.float32)
        assert bool(jnp.allclose(o32, r32, atol=atol, rtol=rtol)), \
            float(jnp.max(jnp.abs(o32 - r32)))

    # ---- n_parallel > 1 path: out = baddbmm(bias, x, weight) ----
    P, B, IN, OUT = 2, 8, 16, 8
    x = jax.random.normal(keys[0], (P, B, IN), jnp.float32)
    w = jax.random.normal(keys[1], (P, IN, OUT), jnp.float32) / jnp.sqrt(IN)
    b = jax.random.normal(keys[2], (P, 1, OUT), jnp.float32) * 0.1
    params = pack_dense_parallel_params(w, b)            # pack once, reuse every step
    out = dense_parallel_apply(x, params)
    ref = b + jnp.einsum("pbk,pkn->pbn", x, w)
    assert out.shape == (P, B, OUT)
    check(out, ref, 1e-4, 1e-4)

    # ---- bf16 activations/weights with f32 MXU accumulation ----
    params_bf16 = pack_dense_parallel_params(w.astype(jnp.bfloat16), b)
    out_bf16 = dense_parallel_apply(x.astype(jnp.bfloat16), params_bf16)
    assert out_bf16.dtype == jnp.bfloat16
    check(out_bf16, ref, 0.1, 0.1)

    # ---- n_parallel in (None, 1) path: out = F.linear(x, W, b); x bytes > W bytes
    #      so the N axis becomes innermost (x tile resident, W streams). ----
    B1, IN1, OUT1 = 512, 64, 8
    x1 = jax.random.normal(keys[3], (B1, IN1), jnp.float32)
    w1 = jax.random.normal(keys[4], (OUT1, IN1), jnp.float32) / jnp.sqrt(IN1)
    b1 = jax.random.normal(keys[5], (OUT1,), jnp.float32) * 0.1
    params1 = pack_dense_parallel_params(w1, b1)
    out1 = dense_parallel_apply(x1, params1)
    ref1 = x1 @ w1.T + b1
    assert out1.shape == (B1, OUT1)
    check(out1, ref1, 5e-2, 5e-2)

    # ---- K-tiled path (reduction grid axis + f32 accumulator scratch), forced via k_tile ----
    P2, B2, IN2, OUT2 = 2, 16, 256, 24
    x2 = jax.random.normal(keys[6], (P2, B2, IN2), jnp.float32)
    w2 = jax.random.normal(keys[7], (P2, IN2, OUT2), jnp.float32) / jnp.sqrt(IN2)
    b2 = jax.random.normal(keys[8], (P2, 1, OUT2), jnp.float32) * 0.1
    params2 = pack_dense_parallel_params(w2, b2)
    out2 = dense_parallel_apply(x2, params2, k_tile=128)
    ref2 = b2 + jnp.einsum("pbk,pkn->pbn", x2, w2)
    assert out2.shape == (P2, B2, OUT2)
    check(out2, ref2, 5e-2, 5e-2)

    # TODO(synk): reset_parameters() / load_module_list_weights() are host-side
    # initialization utilities, not part of the forward pass, and are not kernels.
    print("KERNEL_OK")
</pallas_src>

<mosaic_0001>
module attributes {stable_mosaic.version = 11 : i64} {
  func.func @_dense_parallel_kernel(%arg0: i32, %arg1: i32, %arg2: i32, %arg3: memref<1x8x16xf32, #tpu.memory_space<vmem>>, %arg4: memref<1x16x128xf32, #tpu.memory_space<vmem>>, %arg5: memref<1x1x128xf32, #tpu.memory_space<vmem>>, %arg6: memref<1x8x128xf32, #tpu.memory_space<vmem>>) attributes {dimension_semantics = [#tpu.dimension_semantics<parallel>, #tpu.dimension_semantics<parallel>, #tpu.dimension_semantics<parallel>], iteration_bounds = array<i64: 2, 1, 1>, scalar_prefetch = 0 : i64, scratch_operands = 0 : i64, tpu.core_type = #tpu.core_type<tc>, window_params = [{transform_indices = @transform_0, window_bounds = array<i64: 1, 8, 16>}, {transform_indices = @transform_1, window_bounds = array<i64: 1, 16, 128>}, {transform_indices = @transform_2, window_bounds = array<i64: 1, 1, 128>}, {transform_indices = @transform_3, window_bounds = array<i64: 1, 8, 128>}]} {
    %c0 = arith.constant 0 : index
    %c0_0 = arith.constant 0 : index
    %c0_1 = arith.constant 0 : index
    %0 = vector.load %arg3[%c0, %c0_0, %c0_1] : memref<1x8x16xf32, #tpu.memory_space<vmem>>, vector<1x8x16xf32>
    %c0_2 = arith.constant 0 : index
    %c0_3 = arith.constant 0 : index
    %c0_4 = arith.constant 0 : index
    %1 = vector.load %arg4[%c0_2, %c0_3, %c0_4] : memref<1x16x128xf32, #tpu.memory_space<vmem>>, vector<1x16x128xf32>
    "tpu.trace_start"() <{level = 10 : i32, message = "pmk,pkn->pmn"}> : () -> ()
    %cst = arith.constant dense<0.000000e+00> : vector<1x8x128xf32>
    %2 = tpu.matmul %0, %1, %cst {dimension_numbers = #tpu.dot_dimension_numbers<[2], [1], [1], [2], [0, 0, 0, 1, 1, 2], [0], [0]>} : vector<1x8x16xf32>, vector<1x16x128xf32>, vector<1x8x128xf32> -> vector<1x8x128xf32>
    "tpu.trace_stop"() : () -> ()
    %c0_5 = arith.constant 0 : index
    %c0_6 = arith.constant 0 : index
    %c0_7 = arith.constant 0 : index
    %3 = vector.load %arg5[%c0_5, %c0_6, %c0_7] : memref<1x1x128xf32, #tpu.memory_space<vmem>>, vector<1x1x128xf32>
    %4 = vector.broadcast %3 : vector<1x1x128xf32> to vector<1x8x128xf32>
    %5 = arith.addf %2, %4 : vector<1x8x128xf32>
    %c0_8 = arith.constant 0 : index
    %c0_9 = arith.constant 0 : index
    %c0_10 = arith.constant 0 : index
    %6 = vector.load %arg6[%c0_8, %c0_9, %c0_10] : memref<1x8x128xf32, #tpu.memory_space<vmem>>, vector<1x8x128xf32>
    tpu.vector_store %arg6[%c0_8, %c0_9, %c0_10], %5 {strides = array<i32>} : memref<1x8x128xf32, #tpu.memory_space<vmem>>, vector<1x8x128xf32>,
    return
  }
  func.func @transform_0(%arg0: i32, %arg1: i32, %arg2: i32) -> (i32, i32, i32) {
    %c0_i32 = arith.constant 0 : i32
    %c0_i32_0 = arith.constant 0 : i32
    return %arg0, %arg2, %c0_i32 : i32, i32, i32
  }
  func.func @transform_1(%arg0: i32, %arg1: i32, %arg2: i32) -> (i32, i32, i32) {
    %c0_i32 = arith.constant 0 : i32
    %c0_i32_0 = arith.constant 0 : i32
    return %arg0, %c0_i32, %arg1 : i32, i32, i32
  }
  func.func @transform_2(%arg0: i32, %arg1: i32, %arg2: i32) -> (i32, i32, i32) {
    %c0_i32 = arith.constant 0 : i32
    %c0_i32_0 = arith.constant 0 : i32
    return %arg0, %c0_i32, %arg1 : i32, i32, i32
  }
  func.func @transform_3(%arg0: i32, %arg1: i32, %arg2: i32) -> (i32, i32, i32) {
    %c0_i32 = arith.constant 0 : i32
    return %arg0, %arg2, %arg1 : i32, i32, i32
  }
}

</mosaic_0001>

<llo_original>
// kernel: _dense_parallel_3d.1
$region0: #{_dense_parallel_3d.1}
  #allocation0 [shape = 'u32[]', space=smem, size = 0x4, offset = 0x4, fixed_abs, tag = 'smem constant byte address 0x4 - core index']
  #allocation1 [shape = 'u32[144,128]{1,0:T(1,128)}', space=vmem, size = 0x12000, scoped, tag = 'internal scratch']
  %s0 = inlined_call_operand.hbm [shape: f32[2,8,16], index: 0, kind: input, shape index: {}]
  %s1 = inlined_call_operand.hbm [shape: f32[2,16,128], index: 1, kind: input, shape index: {}]
  %s2 = inlined_call_operand.vmem [shape: f32[2,1,128], index: 2, kind: input, shape index: {}]
  %s3 = inlined_call_operand.hbm [shape: f32[2,8,128], index: 3, kind: output, shape index: {}]
  %s4 = sld [smem:[#allocation0]]
  $region53: #{_dense_parallel_3d.1} parent=0
    _
  %s6 = ssub.s32 1, %s4
  %s7 = scalar_select 0, %s6, %s4
  $region1: #{_dense_parallel_3d.1} parent=0
    #allocation2 [shape = 'u8[8192]{0}', space=vmem, size = 0x2000, scoped, tag = 'input window, operand 0']
    #allocation3 [shape = 's32[2]{0}', space=sflag, size = 0x8, scoped, tag = 'scoped memory for _dense_parallel_3d.1']
    #allocation4 [shape = 's32[2]{0}', space=sflag, size = 0x8, scoped, tag = 'scoped memory for _dense_parallel_3d.1']
    #allocation5 [shape = 'u8[16384]{0}', space=vmem, size = 0x4000, scoped, tag = 'input window, operand 1']
    #allocation6 [shape = 's32[2]{0}', space=sflag, size = 0x8, scoped, tag = 'scoped memory for _dense_parallel_3d.1']
    #allocation7 [shape = 'u8[8192]{0}', space=vmem, size = 0x2000, scoped, tag = 'output window, operand 0']
    %8 = vsyncpa [#allocation3], 0
    %s9 = scalar_lea.sflag [#allocation3], 1
    %10 = vsyncpa %s9, 0
    %11 = vsyncpa [#allocation6], 0
    %s12 = scalar_lea.sflag [#allocation6], 1
    %13 = vsyncpa %s12, 0
    %14 = vsyncpa [#allocation4], 0
    %s15 = scalar_lea.sflag [#allocation4], 1
    %16 = vsyncpa %s15, 0
    loop: start=0, step=1, limit=4
    $region2: #{_dense_parallel_3d.1} parent=1 // loop_pre_header
      _
    $region3: #{_dense_parallel_3d.1} parent=1 // loop_header
      %s18 = sphi 0, %s22
      %p19 = scmp.ge.s32.totalorder %s18, 4
      %s25 = sphi 0, %s44
      %s26 = sphi 0, %s40
      %s27 = sphi 0, %s36
      %s28 = sphi 0, %s25
      %s29 = sphi 0, %s26
      %s30 = sphi 0, %s27
      %s31 = sphi 0, %s28
      %s32 = sphi 0, %s29
      %s33 = sphi 0, %s30
      %s49 = sphi 0, %s51
      %s52 = sphi 0, %s49
      %s53 = sphi 0, %s52
      %s69 = sphi 0, %s53
      %s77 = sphi 0, %s79
      %s80 = sphi 0, %s77
      %s81 = sphi 0, %s80
      %s97 = sphi 0, %s81
      %s105 = sphi 0, %s107
      %s108 = sphi 0, %s105
      %s109 = sphi 0, %s108
      %s125 = sphi 0, %s109
      %s135 = sphi 0, %s137
      %s138 = sphi 0, %s135
      %s139 = sphi 0, %s138
      %s155 = sphi 0, %s139
    $region4: #{_dense_parallel_3d.1} parent=1 // loop_header_branch
      %21 = sbr.rel (%p19) target = $region8
    $region5: #{_dense_parallel_3d.1} parent=1 // loop_body
      %s23 = ssub.s32 %s18, 1
      %s24 = ssub.s32 %s18, 2
      %s34 = sadd.s32 1, %s27
      %p35 = scmp.ge.s32.totalorder %s34, 1
      %s36 = scalar_select %p35, 0, %s34
      %s37 = sadd.s32 1, %s26
      %s38 = scalar_select %p35, %s37, %s26
      %p39 = scmp.ge.s32.totalorder %s38, 1
      %s40 = scalar_select %p39, 0, %s38
      %s41 = sadd.s32 1, %s25
      %s42 = scalar_select %p39, %s41, %s25
      %p43 = scmp.ge.s32.totalorder %s42, 2
      %s44 = scalar_select %p43, 0, %s42
      %s45 = ssub.s32 %s25, %s44
      %s46 = ssub.s32 %s27, %s36
      %s47 = sor.u32 %s45, %s46
      %p48 = scmp.eq.s32.totalorder %s47, 0
      %s50 = sadd.s32 %s49, 1
      %s51 = scalar_select %p48, %s49, %s50
      %p54 = pneg %p48
      %p55 = scmp.eq.s32.totalorder %s18, 1
      %p56 = por %p54, %p55
      %p57 = scmp.ne.s32.totalorder %s49, %s52
      %p58 = scmp.eq.s32.totalorder %s18, 0
      %p59 = por %p57, %p58
      %p60 = scmp.ne.s32.totalorder %s49, %s52
      %p61 = scmp.eq.s32.totalorder %s23, 1
      %p62 = por %p60, %p61
      %p63 = scmp.ne.s32.totalorder %s52, %s53
      %p64 = scmp.eq.s32.totalorder %s23, 0
      %p65 = por %p63, %p64
      %p66 = scmp.ne.s32.totalorder %s52, %s53
      %p67 = scmp.eq.s32.totalorder %s24, 1
      %p68 = por %p66, %p67
      %p70 = scmp.ne.s32.totalorder %s53, %s69
      %p71 = scmp.eq.s32.totalorder %s24, 0
      %p72 = por %p70, %p71
      %s73 = ssub.s32 %s25, %s44
      %s74 = ssub.s32 %s26, %s40
      %s75 = sor.u32 %s73, %s74
      %p76 = scmp.eq.s32.totalorder %s75, 0
      %s78 = sadd.s32 %s77, 1
      %s79 = scalar_select %p76, %s77, %s78
      %p82 = pneg %p76
      %p83 = scmp.eq.s32.totalorder %s18, 1
      %p84 = por %p82, %p83
      %p85 = scmp.ne.s32.totalorder %s77, %s80
      %p86 = scmp.eq.s32.totalorder %s18, 0
      %p87 = por %p85, %p86
      %p88 = scmp.ne.s32.totalorder %s77, %s80
      %p89 = scmp.eq.s32.totalorder %s23, 1
      %p90 = por %p88, %p89
      %p91 = scmp.ne.s32.totalorder %s80, %s81
      %p92 = scmp.eq.s32.totalorder %s23, 0
      %p93 = por %p91, %p92
      %p94 = scmp.ne.s32.totalorder %s80, %s81
      %p95 = scmp.eq.s32.totalorder %s24, 1
      %p96 = por %p94, %p95
      %p98 = scmp.ne.s32.totalorder %s81, %s97
      %p99 = scmp.eq.s32.totalorder %s24, 0
      %p100 = por %p98, %p99
      %s101 = ssub.s32 %s25, %s44
      %s102 = ssub.s32 %s26, %s40
      %s103 = sor.u32 %s101, %s102
      %p104 = scmp.eq.s32.totalorder %s103, 0
      %s106 = sadd.s32 %s105, 1
      %s107 = scalar_select %p104, %s105, %s106
      %p110 = pneg %p104
      %p111 = scmp.eq.s32.totalorder %s18, 1
      %p112 = por %p110, %p111
      %p113 = scmp.ne.s32.totalorder %s105, %s108
      %p114 = scmp.eq.s32.totalorder %s18, 0
      %p115 = por %p113, %p114
      %p116 = scmp.ne.s32.totalorder %s105, %s108
      %p117 = scmp.eq.s32.totalorder %s23, 1
      %p118 = por %p116, %p117
      %p119 = scmp.ne.s32.totalorder %s108, %s109
      %p120 = scmp.eq.s32.totalorder %s23, 0
      %p121 = por %p119, %p120
      %p122 = scmp.ne.s32.totalorder %s108, %s109
      %p123 = scmp.eq.s32.totalorder %s24, 1
      %p124 = por %p122, %p123
      %p126 = scmp.ne.s32.totalorder %s109, %s125
      %p127 = scmp.eq.s32.totalorder %s24, 0
      %p128 = por %p126, %p127
      %s129 = ssub.s32 %s25, %s44
      %s130 = ssub.s32 %s27, %s36
      %s131 = sor.u32 %s129, %s130
      %s132 = ssub.s32 %s26, %s40
      %s133 = sor.u32 %s131, %s132
      %p134 = scmp.eq.s32.totalorder %s133, 0
      %s136 = sadd.s32 %s135, 1
      %s137 = scalar_select %p134, %s135, %s136
      %p140 = pneg %p134
      %p141 = scmp.eq.s32.totalorder %s18, 1
      %p142 = por %p140, %p141
      %p143 = scmp.ne.s32.totalorder %s135, %s138
      %p144 = scmp.eq.s32.totalorder %s18, 0
      %p145 = por %p143, %p144
      %p146 = scmp.ne.s32.totalorder %s135, %s138
      %p147 = scmp.eq.s32.totalorder %s23, 1
      %p148 = por %p146, %p147
      %p149 = scmp.ne.s32.totalorder %s138, %s139
      %p150 = scmp.eq.s32.totalorder %s23, 0
      %p151 = por %p149, %p150
      %p152 = scmp.ne.s32.totalorder %s138, %s139
      %p153 = scmp.eq.s32.totalorder %s24, 1
      %p154 = por %p152, %p153
      %p156 = scmp.ne.s32.totalorder %s139, %s155
      %p157 = scmp.eq.s32.totalorder %s24, 0
      %p158 = por %p156, %p157
      %p159 = scmp.le.s32.totalorder 1, %s18
      %p160 = scmp.lt.s32.totalorder %s18, 3
      %p161 = pnand %p159, %p160
      %p162 = pneg %p161
      // Predicated region
      $region9: #{_dense_parallel_3d.1} parent=5 // pred_check
        _
      $region10: #{_dense_parallel_3d.1} parent=5 // pred_check_branch
        %164 = sbr.rel (%p161) target = $region12
      $region11: #{_dense_parallel_3d.1} parent=5 // pred_region
        %s165 = ssub.s32 %s18, 1
      $region12: #{_dense_parallel_3d.1} parent=5 // pred_fallthru
        _
      %p166 = scmp.lt.s32.totalorder %s18, 2
      // Predicated region
      $region13: #{_dense_parallel_3d.1} parent=5 // pred_check
        %p167 = pneg %p166
      $region14: #{_dense_parallel_3d.1} parent=5 // pred_check_branch
        %169 = sbr.rel (%p167) target = $region16
      $region15: #{_dense_parallel_3d.1} parent=5 // pred_region
        // Predicated region
        $region17: #{_dense_parallel_3d.1} parent=15 // pred_check
          %p170 = pneg %p59
        $region18: #{_dense_parallel_3d.1} parent=15 // pred_check_branch
          %172 = sbr.rel (%p170) target = $region20
        $region19: #{_dense_parallel_3d.1} parent=15 // pred_region
          %s173 = sand.u32 %s49, 1
          %s174 = scalar_lea.sflag [#allocation3], %s173
          %s175 = sand.u32 %s49, 1
          %s176 = smul.addr %s175, 8
          %s177 = scalar_lea.vmem [#allocation2], %s176
          %s179 = ssub.s32 128, 128
          %180 = vsyncadd %s174, %s179
          %s181 = sadd.s32 %s27, %s25
          %s182 = smul.addr %s181, 128
          %s183 = scalar_lea.hbm %s0, %s182
          %s185 = sshll.u32 %s177, 4
          %s186 = int_to_ptr.vmem [resolvable:$true] %s185
          %188 = dma.hbm_to_vmem [thread:$0]  %s183, 128, %s186, %s174
        $region20: #{_dense_parallel_3d.1} parent=15 // pred_fallthru
          _
        // Predicated region
        $region21: #{_dense_parallel_3d.1} parent=15 // pred_check
          %p189 = pneg %p87
        $region22: #{_dense_parallel_3d.1} parent=15 // pred_check_branch
          %191 = sbr.rel (%p189) target = $region24
        $region23: #{_dense_parallel_3d.1} parent=15 // pred_region
          %s192 = sand.u32 %s77, 1
          %s193 = scalar_lea.sflag [#allocation6], %s192
          %s194 = sand.u32 %s77, 1
          %s195 = smul.addr %s194, 16
          %s196 = scalar_lea.vmem [#allocation5], %s195
          %s198 = ssub.s32 256, 256
          %199 = vsyncadd %s193, %s198
          %s200 = smul.addr %s25, 2
          %s201 = sadd.s32 %s26, %s200
          %s202 = smul.addr %s201, 128
          %s203 = scalar_lea.hbm %s1, %s202
          %s204 = sshll.u32 %s196, 4
          %s205 = int_to_ptr.vmem [resolvable:$true] %s204
          %210 = dma.hbm_to_vmem [thread:$0]  %s203, 256, %s205, %s193, 128, 128, 8
        $region24: #{_dense_parallel_3d.1} parent=15 // pred_fallthru
          _
        // Predicated region
        $region25: #{_dense_parallel_3d.1} parent=15 // pred_check
          %p211 = pneg %p115
        $region26: #{_dense_parallel_3d.1} parent=15 // pred_check_branch
          %213 = sbr.rel (%p211) target = $region28
        $region27: #{_dense_parallel_3d.1} parent=15 // pred_region
          %p214 = scmp.lt.s32.totalorder %s25, 1
          %s215 = scalar_select %p214, %s25, 1
          %p216 = scmp.lt.s32.totalorder %s26, 0
          %s217 = scalar_select %p216, %s26, 0
          %s218 = sadd.s32 %s217, %s215
          %s219 = scalar_lea.vmem %s2, %s218
        $region28: #{_dense_parallel_3d.1} parent=15 // pred_fallthru
          _
      $region16: #{_dense_parallel_3d.1} parent=5 // pred_fallthru
        _
      %p220 = scmp.le.s32.totalorder 1, %s18
      %p221 = scmp.lt.s32.totalorder %s18, 3
      %p222 = pnand %p220, %p221
      %p223 = pneg %p222
      // Predicated region
      $region29: #{_dense_parallel_3d.1} parent=5 // pred_check
        _
      $region30: #{_dense_parallel_3d.1} parent=5 // pred_check_branch
        %225 = sbr.rel (%p222) target = $region32
      $region31: #{_dense_parallel_3d.1} parent=5 // pred_region
        %s226 = ssub.s32 %s18, 1
        %s227 = sand.u32 %s52, 1
        %s228 = scalar_lea.sflag [#allocation3], %s227
        %s229 = sand.u32 %s52, 1
        %s230 = smul.addr %s229, 8
        %s231 = scalar_lea.vmem [#allocation2], %s230
        // Predicated region
        $region33: #{_dense_parallel_3d.1} parent=31 // pred_check
          %p232 = pneg %p65
        $region34: #{_dense_parallel_3d.1} parent=31 // pred_check_branch
          %234 = sbr.rel (%p232) target = $region36
        $region35: #{_dense_parallel_3d.1} parent=31 // pred_region
          %235 = dma.done %s228, 128
        $region36: #{_dense_parallel_3d.1} parent=31 // pred_fallthru
          _
        %s236 = sand.u32 %s80, 1
        %s237 = scalar_lea.sflag [#allocation6], %s236
        %s238 = sand.u32 %s80, 1
        %s239 = smul.addr %s238, 16
        %s240 = scalar_lea.vmem [#allocation5], %s239
        // Predicated region
        $region37: #{_dense_parallel_3d.1} parent=31 // pred_check
          %p241 = pneg %p93
        $region38: #{_dense_parallel_3d.1} parent=31 // pred_check_branch
          %243 = sbr.rel (%p241) target = $region40
        $region39: #{_dense_parallel_3d.1} parent=31 // pred_region
          %244 = dma.done %s237, 256
        $region40: #{_dense_parallel_3d.1} parent=31 // pred_fallthru
          _
        %s245 = sand.u32 %s52, 1
        %s246 = scalar_lea.sflag [#allocation3], %s245
        %s247 = sand.u32 %s52, 1
        %s248 = smul.addr %s247, 8
        %s249 = scalar_lea.vmem [#allocation2], %s248
        %p250 = pneg %p65
        %p251 = pneg %p62
        %s252 = sand.u32 %s80, 1
        %s253 = scalar_lea.sflag [#allocation6], %s252
        %s254 = sand.u32 %s80, 1
        %s255 = smul.addr %s254, 16
        %s256 = scalar_lea.vmem [#allocation5], %s255
        %p257 = pneg %p93
        %p258 = pneg %p90
        %p259 = scmp.lt.s32.totalorder %s28, 1
        %s260 = scalar_select %p259, %s28, 1
        %p261 = scmp.lt.s32.totalorder %s29, 0
        %s262 = scalar_select %p261, %s29, 0
        %s263 = sadd.s32 %s262, %s260
        %s264 = scalar_lea.vmem %s2, %s263
        %p265 = pneg %p121
        %p266 = pneg %p118
        %p267 = pneg %p151
        %p268 = pneg %p148
        %s269 = sand.u32 %s138, 1
        %s270 = scalar_lea.sflag [#allocation4], %s269
        %s271 = sand.u32 %s138, 1
        %s272 = smul.addr %s271, 8
        %s273 = scalar_lea.vmem [#allocation7], %s272
        %p274 = scmp.lt.s32.totalorder %s28, 1
        %s275 = scalar_select %p274, %s28, 1
        %p276 = scmp.lt.s32.totalorder %s29, 0
        %s277 = scalar_select %p276, %s29, 0
        %s278 = sadd.s32 %s277, %s275
        %s279 = scalar_lea.vmem %s2, %s278
        %v280 = vld [vmem:[%s231] sm:$0xff]
        %v281 = vld [vmem:[%s240] sm:$0xff]
        %v282 = vld [vmem:[%s240 + $0x8] sm:$0xff]
        %v283 = vld [vmem:[%s279] sm:$0x1]
        %v285 = vlaneseq
        %v286 = vshrl.u32 %v285, 7
        %v287 = vsub.s32 0, %v286
        %v288 = vrot.slane %v283, %v287
        %vm290 = vcmask 130048
        %v292 = vsel %vm290, %v280, 0
        %294 = vmatprep.subr.mxu0 0.0
        %295 = vmatpush1.msra.mxu0 0.0
        %296 = vmatprep.subr.mxu0 0.0
        %297 = vmatpush1.msra.mxu0 0.0
        %298 = vmatprep.subr.mxu0 0.0
        %299 = vmatpush1.msra.mxu0 0.0
        %300 = vmatprep.subr.mxu0 0.0
        %301 = vmatpush1.msra.mxu0 0.0
        %302 = vmatprep.subr.mxu0 0.0
        %303 = vmatpush1.msra.mxu0 0.0
        %304 = vmatprep.subr.mxu0 0.0
        %305 = vmatpush1.msra.mxu0 0.0
        %306 = vmatprep.subr.mxu0 0.0
        %307 = vmatpush1.msra.mxu0 0.0
        %308 = vmatprep.subr.mxu0 0.0
        %309 = vmatpush1.msra.mxu0 0.0
        %310 = vmatprep.subr.mxu0 0.0
        %311 = vmatpush1.msra.mxu0 0.0
        %312 = vmatprep.subr.mxu0 0.0
        %313 = vmatpush1.msra.mxu0 0.0
        %314 = vmatprep.subr.mxu0 0.0
        %315 = vmatpush1.msra.mxu0 0.0
        %316 = vmatprep.subr.mxu0 0.0
        %317 = vmatpush1.msra.mxu0 0.0
        %318 = vmatprep.subr.mxu0 0.0
        %319 = vmatpush1.msra.mxu0 0.0
        %320 = vmatprep.subr.mxu0 0.0
        %321 = vmatpush1.msra.mxu0 0.0
        %322 = vmatprep.subr.mxu0 0.0
        %323 = vmatpush1.msra.mxu0 %v282
        %324 = vmatprep.subr.mxu0 0.0
        %325 = vmatpush1.msra.mxu0 %v281
        %326 = vmatprep.subr.mxu0 0.0
        %327 = vmatpush2.msra.mxu0 0.0
        %328 = vmatprep.subr.mxu0 0.0
        %329 = vmatpush2.msra.mxu0 0.0
        %330 = vmatprep.subr.mxu0 0.0
        %331 = vmatpush2.msra.mxu0 0.0
        %332 = vmatprep.subr.mxu0 0.0
        %333 = vmatpush2.msra.mxu0 0.0
        %334 = vmatprep.subr.mxu0 0.0
        %335 = vmatpush2.msra.mxu0 0.0
        %336 = vmatprep.subr.mxu0 0.0
        %337 = vmatpush2.msra.mxu0 0.0
        %338 = vmatprep.subr.mxu0 0.0
        %339 = vmatpush2.msra.mxu0 0.0
        %340 = vmatprep.subr.mxu0 0.0
        %341 = vmatpush2.msra.mxu0 0.0
        %342 = vmatprep.subr.mxu0 0.0
        %343 = vmatpush2.msra.mxu0 0.0
        %344 = vmatprep.subr.mxu0 0.0
        %345 = vmatpush2.msra.mxu0 0.0
        %346 = vmatprep.subr.mxu0 0.0
        %347 = vmatpush2.msra.mxu0 0.0
        %348 = vmatprep.subr.mxu0 0.0
        %349 = vmatpush2.msra.mxu0 0.0
        %350 = vmatprep.subr.mxu0 0.0
        %351 = vmatpush2.msra.mxu0 0.0
        %352 = vmatprep.subr.mxu0 0.0
        %353 = vmatpush2.msra.mxu0 0.0
        %354 = vmatprep.subr.mxu0 0.0
        %355 = vmatpush2.msra.mxu0 0.0
        %356 = vmatprep.subr.mxu0 0.0
        %357 = vmatpush2.msra.mxu0 0.0
        %358 = vmatprep.mubr.f32.mxu0 0.0
        %359 = vmatmul.mubr.f32.gmra.mxu0 %v292
        %v360 = vpop.f32.mrf.mxu0
        %v361 = vadd.f32 %v288, %v360
        %v362 = vpop.f32.mrf.mxu0
        %363 = vdwg.mxu0
        %364 = vst [vmem:[%s273] sm:$0xff] %v361
        %s365 = sand.u32 %s138, 1
        %s366 = scalar_lea.sflag [#allocation4], %s365
        %s367 = sand.u32 %s138, 1
        %s368 = smul.addr %s367, 8
        %s369 = scalar_lea.vmem [#allocation7], %s368
        // Predicated region
        $region41: #{_dense_parallel_3d.1} parent=31 // pred_check
          %p370 = pneg %p148
        $region42: #{_dense_parallel_3d.1} parent=31 // pred_check_branch
          %372 = sbr.rel (%p370) target = $region44
        $region43: #{_dense_parallel_3d.1} parent=31 // pred_region
          %s374 = ssub.s32 128, 128
          %375 = vsyncadd %s366, %s374
          %s376 = sadd.s32 %s29, %s30
          %s377 = sadd.s32 %s376, %s28
          %s378 = smul.addr %s377, 128
          %s379 = scalar_lea.hbm %s3, %s378
          %s381 = sshll.u32 %s369, 4
          %s382 = int_to_ptr.vmem [resolvable:$true] %s381
          %384 = dma.vmem_to_hbm [thread:$0]  %s382, 128, %s379, %s366
        $region44: #{_dense_parallel_3d.1} parent=31 // pred_fallthru
          _
      $region32: #{_dense_parallel_3d.1} parent=5 // pred_fallthru
        _
      %p385 = scmp.le.s32.totalorder 2, %s18
      // Predicated region
      $region45: #{_dense_parallel_3d.1} parent=5 // pred_check
        %p386 = pneg %p385
      $region46: #{_dense_parallel_3d.1} parent=5 // pred_check_branch
        %388 = sbr.rel (%p386) target = $region48
      $region47: #{_dense_parallel_3d.1} parent=5 // pred_region
        %s389 = ssub.s32 %s18, 2
        // Predicated region
        $region49: #{_dense_parallel_3d.1} parent=47 // pred_check
          %p390 = pneg %p154
        $region50: #{_dense_parallel_3d.1} parent=47 // pred_check_branch
          %392 = sbr.rel (%p390) target = $region52
        $region51: #{_dense_parallel_3d.1} parent=47 // pred_region
          %s393 = sand.u32 %s139, 1
          %s394 = scalar_lea.sflag [#allocation4], %s393
          %s395 = sand.u32 %s139, 1
          %s396 = smul.addr %s395, 8
          %s397 = scalar_lea.vmem [#allocation7], %s396
          %398 = dma.done %s394, 128
        $region52: #{_dense_parallel_3d.1} parent=47 // pred_fallthru
          _
      $region48: #{_dense_parallel_3d.1} parent=5 // pred_fallthru
        _
    $region6: #{_dense_parallel_3d.1} parent=1 // loop_footer
      %s22 = sadd.s32 1, %s18
    $region7: #{_dense_parallel_3d.1} parent=1 // loop_footer_branch
      %17 = sbr.rel target = $region3
    $region8: #{_dense_parallel_3d.1} parent=1 // loop_exit
      _
    %399 = vsyncpa [#allocation3], 1
    %s400 = scalar_lea.sflag [#allocation3], 1
    %401 = vsyncpa %s400, 1
    %402 = vsyncpa [#allocation6], 1
    %s403 = scalar_lea.sflag [#allocation6], 1
    %404 = vsyncpa %s403, 1
    %405 = vsyncpa [#allocation4], 1
    %s406 = scalar_lea.sflag [#allocation4], 1
    %407 = vsyncpa %s406, 1

</llo_original>
